<compile_context>
chip_gen: v7x
topology: tpu7x:2x2x1
jax: 0.10.0
libtpu: 0.0.40
codegen_flags: <defaults>
</compile_context>

<pallas_src>
import functools
import math

import jax
import jax.numpy as jnp
from jax.experimental import pallas as pl
from jax.experimental.pallas import tpu as pltpu


def _dtype_sublane_multiple(dtype):
    """Sublane packing multiple: 8 for 32-bit, 16 for bf16, 32 for int8/fp8."""
    itemsize = jnp.dtype(dtype).itemsize
    return 8 * max(1, 4 // itemsize)


def _vmem_budgets():
    """(per-block budget, scoped vmem limit, physical capacity) in bytes."""
    try:
        cap = int(pltpu.get_tpu_info().vmem_capacity_bytes)
    except Exception:
        cap = 64 * 1024 * 1024  # v7x-safe default
    return cap // 8, cap // 2, cap


def _legal_row_tiles(n, sub):
    """Row tiles that divide n and are sublane-legal (multiple of `sub` or n)."""
    tiles = []
    for tb in range(1, n + 1):
        if n % tb:
            continue
        if tb == n or tb % sub == 0:
            tiles.append(tb)
    return tiles


def _pick_row_tile(n, row_bytes, budget, sub):
    """Largest legal row tile fitting `budget`, preferring >= 2 grid steps
    so the pipeline overlaps read/writeback and both v7x TCs get work."""
    legal = _legal_row_tiles(n, sub)
    fitting = [t for t in legal if t * row_bytes <= budget]
    if not fitting:
        return min(legal)  # wide rows: caller raises the scoped VMEM limit
    multi = [t for t in fitting if n // t >= 2]
    return max(multi) if multi else max(fitting)


# ---------------------------------------------------------------------------
# Fast path: HBM inputs DMA'd directly into 128-lane-aligned column slices of
# the auto-pipelined VMEM output block (single HBM read + single HBM write).
# ---------------------------------------------------------------------------
def _dma_concat_kernel(flat_sizes, offsets, tb, *refs):
    k = len(flat_sizes)
    in_refs = refs[:k]
    o_ref = refs[k]
    sem = refs[k + 1]

    row0 = pl.multiple_of(pl.program_id(0) * tb, tb)
    copies = []
    for idx in range(k):
        start = offsets[idx]
        size = flat_sizes[idx]
        cp = pltpu.make_async_copy(
            in_refs[idx].at[pl.ds(row0, tb), :],   # (tb, F_i) slab in HBM
            o_ref.at[:, start:start + size],       # lane slice of output block
            sem.at[idx],
        )
        cp.start()
        copies.append(cp)
    # All manual copies MUST complete before the body returns so the
    # auto-pipelined writeback of this output block cannot race them.
    for cp in copies:
        cp.wait()


def _concat_flat_dma(xs_flat, n, flat_sizes, offsets, tb, dtype,
                     vmem_limit, total_bytes):
    k = len(xs_flat)
    total_f = sum(flat_sizes)
    kernel = functools.partial(_dma_concat_kernel, flat_sizes, offsets, tb)

    return pl.pallas_call(
        kernel,
        out_shape=jax.ShapeDtypeStruct((n, total_f), dtype),
        grid_spec=pltpu.PrefetchScalarGridSpec(
            num_scalar_prefetch=0,
            grid=(n // tb,),
            in_specs=[pl.BlockSpec(memory_space=pl.ANY)] * k,
            out_specs=pl.BlockSpec((tb, total_f), lambda b: (b, 0)),
            scratch_shapes=[pltpu.SemaphoreType.DMA((k,))],
        ),
        compiler_params=pltpu.CompilerParams(
            dimension_semantics=("parallel",),
            vmem_limit_bytes=vmem_limit,
        ),
        cost_estimate=pl.CostEstimate(
            flops=0, transcendentals=0, bytes_accessed=2 * total_bytes),
    )(*xs_flat)


# ---------------------------------------------------------------------------
# Fallback: lane-dense vreg copies on flattened (lead, F_i) blocks.
# ---------------------------------------------------------------------------
def _vreg_concat_kernel(flat_sizes, offsets, *refs):
    k = len(flat_sizes)
    in_refs = refs[:k]
    o_ref = refs[k]
    for x_ref, size, start in zip(in_refs, flat_sizes, offsets):
        o_ref[:, start:start + size] = x_ref[...]


def _concat_flat_vreg(xs_flat, n, flat_sizes, offsets, tb, dtype,
                      vmem_limit, total_bytes):
    k = len(xs_flat)
    total_f = sum(flat_sizes)
    kernel = functools.partial(_vreg_concat_kernel, flat_sizes, offsets)

    in_specs = [pl.BlockSpec((tb, f), lambda b: (b, 0)) for f in flat_sizes]
    out_spec = pl.BlockSpec((tb, total_f), lambda b: (b, 0))

    return pl.pallas_call(
        kernel,
        out_shape=jax.ShapeDtypeStruct((n, total_f), dtype),
        grid_spec=pltpu.PrefetchScalarGridSpec(
            num_scalar_prefetch=0,
            grid=(n // tb,),
            in_specs=in_specs,
            out_specs=out_spec,
        ),
        compiler_params=pltpu.CompilerParams(
            dimension_semantics=("parallel",),
            vmem_limit_bytes=vmem_limit,
        ),
        cost_estimate=pl.CostEstimate(
            flops=0, transcendentals=0, bytes_accessed=2 * total_bytes),
    )(*xs_flat)


def pallas_concat(xs, dim: int = 1):
    """torch.cat(xs, dim=dim) as a Pallas TPU kernel (memory-bound copy)."""
    xs = list(xs)
    assert len(xs) >= 1
    rank = len(xs[0].shape)
    d = dim % rank
    shapes = [tuple(int(s) for s in x.shape) for x in xs]
    base = shapes[0]
    dtype = xs[0].dtype
    for s, x in zip(shapes, xs):
        assert len(s) == rank, "all inputs must have the same rank"
        assert s[:d] == base[:d] and s[d + 1:] == base[d + 1:], \
            "non-concat dims must match"
        assert x.dtype == dtype, "all inputs must share a dtype"

    lead = math.prod(base[:d]) if d > 0 else 1
    trail = math.prod(base[d + 1:]) if d + 1 < rank else 1
    sizes_d = [s[d] for s in shapes]
    total_d = sum(sizes_d)

    flat_sizes = [c * trail for c in sizes_d]
    offsets = []
    off = 0
    for f in flat_sizes:
        offsets.append(off)
        off += f
    total_f = off

    itemsize = jnp.dtype(dtype).itemsize
    total_bytes = lead * total_f * itemsize
    sub = _dtype_sublane_multiple(dtype)
    block_budget, vmem_limit, vmem_cap = _vmem_budgets()

    xs_flat = [x.reshape(lead, f) for x, f in zip(xs, flat_sizes)]

    # Fast DMA path whenever every per-input flat span (and therefore every
    # cumulative column offset) is a multiple of 128 lanes.
    lane_aligned = all(f % 128 == 0 for f in flat_sizes) and total_f > 0

    if lane_aligned:
        row_bytes = total_f * itemsize          # only the output block in VMEM
        tb = _pick_row_tile(lead, row_bytes, block_budget, sub)
        need = tb * row_bytes
        if need > block_budget:
            # Wide rows: grow the scoped limit for the double-buffered block.
            # TODO(synk): add a 128-aligned column-tiling grid axis so a single
            # row can never exceed VMEM (matters most on v7x's 64 MiB VMEM).
            vmem_limit = min(vmem_cap, max(vmem_limit, 2 * need + (8 << 20)))
        out_flat = _concat_flat_dma(xs_flat, lead, flat_sizes, offsets, tb,
                                    dtype, vmem_limit, total_bytes)
    else:
        # Lane-dense vreg fallback: inputs + output blocks, each double-buffered.
        row_bytes = 4 * total_f * itemsize
        tb = _pick_row_tile(lead, row_bytes, block_budget, sub)
        need = tb * row_bytes
        if need > block_budget:
            vmem_limit = min(vmem_cap, max(vmem_limit, need + (8 << 20)))
        out_flat = _concat_flat_vreg(xs_flat, lead, flat_sizes, offsets, tb,
                                     dtype, vmem_limit, total_bytes)

    return out_flat.reshape(base[:d] + (total_d,) + base[d + 1:])


if __name__ == "__main__":
    key = jax.random.PRNGKey(0)
    k1, k2, k3, k4, k5, k6, k7 = jax.random.split(key, 7)

    # 1) NCHW concat along channels (dim=1), fast DMA path (F_i % 128 == 0).
    x1 = jax.random.normal(k1, (2, 4, 16, 16), dtype=jnp.float32)
    x2 = jax.random.normal(k2, (2, 3, 16, 16), dtype=jnp.float32)
    x3 = jax.random.normal(k3, (2, 5, 16, 16), dtype=jnp.float32)
    out = jax.block_until_ready(pallas_concat([x1, x2, x3], dim=1))
    ref = jnp.concatenate([x1, x2, x3], axis=1)
    assert out.shape == (2, 12, 16, 16), out.shape
    assert jnp.array_equal(out, ref), "Pallas concat (fast path) mismatch"

    # 2) Larger batch: exercises the multi-step pipelined / megacore grid.
    w1 = jax.random.normal(k4, (16, 4, 8, 16), dtype=jnp.float32)
    w2 = jax.random.normal(k5, (16, 2, 8, 16), dtype=jnp.float32)
    out_w = jax.block_until_ready(pallas_concat([w1, w2], dim=1))
    ref_w = jnp.concatenate([w1, w2], axis=1)
    assert jnp.array_equal(out_w, ref_w), "Pallas concat (multi-step) mismatch"

    # 3) Unaligned spans (H*W = 16): lane-dense vreg fallback path.
    y1 = jax.random.normal(k6, (2, 4, 4, 4), dtype=jnp.float32)
    y2 = jax.random.normal(k7, (2, 6, 4, 4), dtype=jnp.float32)
    out2 = jax.block_until_ready(pallas_concat([y1, y2], dim=1))
    ref2 = jnp.concatenate([y1, y2], axis=1)
    assert jnp.array_equal(out2, ref2), "Pallas concat (fallback) mismatch"

    print("KERNEL_OK")
</pallas_src>

<mosaic_0001>
module attributes {stable_mosaic.version = 11 : i64} {
  func.func @_dma_concat_kernel(%arg0: i32, %arg1: memref<2x1024xf32, #tpu.memory_space<any>>, %arg2: memref<2x768xf32, #tpu.memory_space<any>>, %arg3: memref<2x1280xf32, #tpu.memory_space<any>>, %arg4: memref<2x3072xf32, #tpu.memory_space<vmem>>, %arg5: memref<3x!tpu.dma_semaphore, #tpu.memory_space<semaphore_mem>>) attributes {dimension_semantics = [#tpu.dimension_semantics<parallel>], iteration_bounds = array<i64: 1>, scalar_prefetch = 0 : i64, scratch_operands = 1 : i64, tpu.core_type = #tpu.core_type<tc>, window_params = [{}, {}, {}, {transform_indices = @transform_3, window_bounds = array<i64: 2, 3072>}]} {
    %c2_i32 = arith.constant 2 : i32
    %0 = arith.muli %arg0, %c2_i32 : i32
    %1 = tpu.assume_multiple %0, 2 : i32
    %c0_i32 = arith.constant 0 : i32
    %c0_i32_0 = arith.constant 0 : i32
    %2 = tpu.memref_slice %arg1[%1, %c0_i32_0] : memref<2x1024xf32, #tpu.memory_space<any>> -> memref<2x1024xf32, #tpu.memory_space<any>>
    %c0_i32_1 = arith.constant 0 : i32
    %c0_i32_2 = arith.constant 0 : i32
    %3 = tpu.memref_slice %arg4[%c0_i32_1, %c0_i32_2] : memref<2x3072xf32, #tpu.memory_space<vmem>> -> memref<2x1024xf32, #tpu.memory_space<vmem>>
    %4 = tpu.memref_slice %arg5[%c0_i32] : memref<3x!tpu.dma_semaphore, #tpu.memory_space<semaphore_mem>> -> memref<1x!tpu.dma_semaphore, #tpu.memory_space<semaphore_mem>>
    %5 = tpu.memref_squeeze %4 : memref<1x!tpu.dma_semaphore, #tpu.memory_space<semaphore_mem>> -> memref<!tpu.dma_semaphore, #tpu.memory_space<semaphore_mem>>
    tpu.enqueue_dma source(%2 : memref<2x1024xf32, #tpu.memory_space<any>>) target(%3 : memref<2x1024xf32, #tpu.memory_space<vmem>>) target_semaphore(%5 : memref<!tpu.dma_semaphore, #tpu.memory_space<semaphore_mem>>)
    %c1_i32 = arith.constant 1 : i32
    %c0_i32_3 = arith.constant 0 : i32
    %6 = tpu.memref_slice %arg2[%1, %c0_i32_3] : memref<2x768xf32, #tpu.memory_space<any>> -> memref<2x768xf32, #tpu.memory_space<any>>
    %c0_i32_4 = arith.constant 0 : i32
    %c1024_i32 = arith.constant 1024 : i32
    %7 = tpu.memref_slice %arg4[%c0_i32_4, %c1024_i32] : memref<2x3072xf32, #tpu.memory_space<vmem>> -> memref<2x768xf32, #tpu.memory_space<vmem>>
    %8 = tpu.memref_slice %arg5[%c1_i32] : memref<3x!tpu.dma_semaphore, #tpu.memory_space<semaphore_mem>> -> memref<1x!tpu.dma_semaphore, #tpu.memory_space<semaphore_mem>>
    %9 = tpu.memref_squeeze %8 : memref<1x!tpu.dma_semaphore, #tpu.memory_space<semaphore_mem>> -> memref<!tpu.dma_semaphore, #tpu.memory_space<semaphore_mem>>
    tpu.enqueue_dma source(%6 : memref<2x768xf32, #tpu.memory_space<any>>) target(%7 : memref<2x768xf32, #tpu.memory_space<vmem>>) target_semaphore(%9 : memref<!tpu.dma_semaphore, #tpu.memory_space<semaphore_mem>>)
    %c2_i32_5 = arith.constant 2 : i32
    %c0_i32_6 = arith.constant 0 : i32
    %10 = tpu.memref_slice %arg3[%1, %c0_i32_6] : memref<2x1280xf32, #tpu.memory_space<any>> -> memref<2x1280xf32, #tpu.memory_space<any>>
    %c0_i32_7 = arith.constant 0 : i32
    %c1792_i32 = arith.constant 1792 : i32
    %11 = tpu.memref_slice %arg4[%c0_i32_7, %c1792_i32] : memref<2x3072xf32, #tpu.memory_space<vmem>> -> memref<2x1280xf32, #tpu.memory_space<vmem>>
    %12 = tpu.memref_slice %arg5[%c2_i32_5] : memref<3x!tpu.dma_semaphore, #tpu.memory_space<semaphore_mem>> -> memref<1x!tpu.dma_semaphore, #tpu.memory_space<semaphore_mem>>
    %13 = tpu.memref_squeeze %12 : memref<1x!tpu.dma_semaphore, #tpu.memory_space<semaphore_mem>> -> memref<!tpu.dma_semaphore, #tpu.memory_space<semaphore_mem>>
    tpu.enqueue_dma source(%10 : memref<2x1280xf32, #tpu.memory_space<any>>) target(%11 : memref<2x1280xf32, #tpu.memory_space<vmem>>) target_semaphore(%13 : memref<!tpu.dma_semaphore, #tpu.memory_space<semaphore_mem>>)
    %c0_i32_8 = arith.constant 0 : i32
    %c0_i32_9 = arith.constant 0 : i32
    %14 = tpu.memref_slice %arg1[%1, %c0_i32_9] : memref<2x1024xf32, #tpu.memory_space<any>> -> memref<2x1024xf32, #tpu.memory_space<any>>
    %c0_i32_10 = arith.constant 0 : i32
    %c0_i32_11 = arith.constant 0 : i32
    %15 = tpu.memref_slice %arg4[%c0_i32_10, %c0_i32_11] : memref<2x3072xf32, #tpu.memory_space<vmem>> -> memref<2x1024xf32, #tpu.memory_space<vmem>>
    %16 = tpu.memref_slice %arg5[%c0_i32_8] : memref<3x!tpu.dma_semaphore, #tpu.memory_space<semaphore_mem>> -> memref<1x!tpu.dma_semaphore, #tpu.memory_space<semaphore_mem>>
    %17 = tpu.memref_squeeze %16 : memref<1x!tpu.dma_semaphore, #tpu.memory_space<semaphore_mem>> -> memref<!tpu.dma_semaphore, #tpu.memory_space<semaphore_mem>>
    tpu.wait_dma2 semaphore(%17 : memref<!tpu.dma_semaphore, #tpu.memory_space<semaphore_mem>>) src(%14 : memref<2x1024xf32, #tpu.memory_space<any>>) dst(%15 : memref<2x1024xf32, #tpu.memory_space<vmem>>)
    %c1_i32_12 = arith.constant 1 : i32
    %c0_i32_13 = arith.constant 0 : i32
    %18 = tpu.memref_slice %arg2[%1, %c0_i32_13] : memref<2x768xf32, #tpu.memory_space<any>> -> memref<2x768xf32, #tpu.memory_space<any>>
    %c0_i32_14 = arith.constant 0 : i32
    %c1024_i32_15 = arith.constant 1024 : i32
    %19 = tpu.memref_slice %arg4[%c0_i32_14, %c1024_i32_15] : memref<2x3072xf32, #tpu.memory_space<vmem>> -> memref<2x768xf32, #tpu.memory_space<vmem>>
    %20 = tpu.memref_slice %arg5[%c1_i32_12] : memref<3x!tpu.dma_semaphore, #tpu.memory_space<semaphore_mem>> -> memref<1x!tpu.dma_semaphore, #tpu.memory_space<semaphore_mem>>
    %21 = tpu.memref_squeeze %20 : memref<1x!tpu.dma_semaphore, #tpu.memory_space<semaphore_mem>> -> memref<!tpu.dma_semaphore, #tpu.memory_space<semaphore_mem>>
    tpu.wait_dma2 semaphore(%21 : memref<!tpu.dma_semaphore, #tpu.memory_space<semaphore_mem>>) src(%18 : memref<2x768xf32, #tpu.memory_space<any>>) dst(%19 : memref<2x768xf32, #tpu.memory_space<vmem>>)
    %c2_i32_16 = arith.constant 2 : i32
    %c0_i32_17 = arith.constant 0 : i32
    %22 = tpu.memref_slice %arg3[%1, %c0_i32_17] : memref<2x1280xf32, #tpu.memory_space<any>> -> memref<2x1280xf32, #tpu.memory_space<any>>
    %c0_i32_18 = arith.constant 0 : i32
    %c1792_i32_19 = arith.constant 1792 : i32
    %23 = tpu.memref_slice %arg4[%c0_i32_18, %c1792_i32_19] : memref<2x3072xf32, #tpu.memory_space<vmem>> -> memref<2x1280xf32, #tpu.memory_space<vmem>>
    %24 = tpu.memref_slice %arg5[%c2_i32_16] : memref<3x!tpu.dma_semaphore, #tpu.memory_space<semaphore_mem>> -> memref<1x!tpu.dma_semaphore, #tpu.memory_space<semaphore_mem>>
    %25 = tpu.memref_squeeze %24 : memref<1x!tpu.dma_semaphore, #tpu.memory_space<semaphore_mem>> -> memref<!tpu.dma_semaphore, #tpu.memory_space<semaphore_mem>>
    tpu.wait_dma2 semaphore(%25 : memref<!tpu.dma_semaphore, #tpu.memory_space<semaphore_mem>>) src(%22 : memref<2x1280xf32, #tpu.memory_space<any>>) dst(%23 : memref<2x1280xf32, #tpu.memory_space<vmem>>)
    return
  }
  func.func @transform_3(%arg0: i32) -> (i32, i32) {
    %c0_i32 = arith.constant 0 : i32
    %c0_i32_0 = arith.constant 0 : i32
    return %arg0, %c0_i32 : i32, i32
  }
}

</mosaic_0001>

<llo_original>
// kernel: tpu_custom_call.1
$region0: #{tpu_custom_call.1}
  #allocation0 [shape = 'u32[]', space=smem, size = 0x4, offset = 0x4, fixed_abs, tag = 'smem constant byte address 0x4 - core index']
  #allocation1 [shape = 'u32[144,128]{1,0:T(1,128)}', space=vmem, size = 0x12000, scoped, tag = 'internal scratch']
  #allocation2 [shape = 's32[3]{0}', space=sflag, size = 0xc, scoped, tag = 'scratch operand']
  #allocation5 [shape = 's32[]', space=sflag, size = 0x4, offset = 0, fixed_abs, tag = 'sflag constant byte address 0x0 - dummy sync flag']
  #allocation6 [shape = 's32[]', space=sflag, size = 0x4, offset = 0, fixed_abs, tag = 'sflag constant byte address 0x0 - dummy sync flag']
  #allocation7 [shape = 'u32[]', space=smem, size = 0x4, offset = 0x44, fixed_abs, tag = 'smem constant byte address 0x44 - assertion arg 0']
  #allocation8 [shape = 'u32[]', space=smem, size = 0x4, offset = 0x48, fixed_abs, tag = 'smem constant byte address 0x48 - assertion arg 1']
  #allocation9 [shape = 's32[]', space=sflag, size = 0x4, offset = 0, fixed_abs, tag = 'sflag constant byte address 0x0 - dummy sync flag']
  #allocation10 [shape = 's32[]', space=sflag, size = 0x4, offset = 0, fixed_abs, tag = 'sflag constant byte address 0x0 - dummy sync flag']
  #allocation11 [shape = 's32[]', space=sflag, size = 0x4, offset = 0, fixed_abs, tag = 'sflag constant byte address 0x0 - dummy sync flag']
  #allocation12 [shape = 's32[]', space=sflag, size = 0x4, offset = 0, fixed_abs, tag = 'sflag constant byte address 0x0 - dummy sync flag']
  %s0 = inlined_call_operand.hbm [shape: f32[2,1024], index: 0, kind: input, shape index: {}]
  %s1 = inlined_call_operand.hbm [shape: f32[2,768], index: 1, kind: input, shape index: {}]
  %s2 = inlined_call_operand.hbm [shape: f32[2,1280], index: 2, kind: input, shape index: {}]
  %s3 = inlined_call_operand.hbm [shape: f32[2,3072], index: 3, kind: output, shape index: {}]
  %s4 = sld [smem:[#allocation0]]
  $region22: #{tpu_custom_call.1} parent=0
    _
  %s6 = ssub.s32 1, %s4
  %s7 = scalar_select 0, %s6, %s4
  $region1: #{tpu_custom_call.1} parent=0
    #allocation3 [shape = 'u8[24576]{0}', space=vmem, size = 0x6000, scoped, tag = 'output window, operand 0, single buffered']
    #allocation4 [shape = 's32[1]{0}', space=sflag, size = 0x4, scoped, tag = 'scoped memory for tpu_custom_call.1']
    %8 = vsyncpa [#allocation4], 0
    %s9 = smul.u32 0, 2
    %s10 = sshra.s32 %s9, 1
    %s11 = sand.u32 %s9, 1
    %s12 = smul.u32 %s10, 8
    %s13 = smul.addr %s12, 32
    %s14 = scalar_lea.hbm %s0, %s13
    // Predicated region
    $region2: #{tpu_custom_call.1} parent=1 // pred_check
      _
    $region3: #{tpu_custom_call.1} parent=1 // pred_check_branch
      %16 = sbr.rel target = $region5
    $region4: #{tpu_custom_call.1} parent=1 // pred_region
      %17 = sst [smem:[#allocation7]] [#allocation6]
      %18 = sst [smem:[#allocation8]] [#allocation5]
    $region5: #{tpu_custom_call.1} parent=1 // pred_fallthru
      _
    %20 = shalt.err (0)
    %s22 = sshll.u32 [#allocation3], 4
    %s23 = int_to_ptr.vmem [resolvable:$true] %s22
    %25 = dma.hbm_to_vmem [thread:$0]  %s14, 256, %s23, [#allocation2]
    %s26 = smul.u32 %s10, 6
    %s27 = smul.addr %s26, 32
    %s28 = scalar_lea.hbm %s1, %s27
    %s29 = scalar_lea.vmem [#allocation3], 16
    %s30 = scalar_lea.sflag [#allocation2], 1
    // Predicated region
    $region6: #{tpu_custom_call.1} parent=1 // pred_check
      _
    $region7: #{tpu_custom_call.1} parent=1 // pred_check_branch
      %32 = sbr.rel target = $region9
    $region8: #{tpu_custom_call.1} parent=1 // pred_region
      %33 = sst [smem:[#allocation7]] [#allocation10]
      %34 = sst [smem:[#allocation8]] [#allocation9]
    $region9: #{tpu_custom_call.1} parent=1 // pred_fallthru
      _
    %36 = shalt.err (0)
    %s38 = sshll.u32 %s29, 4
    %s39 = int_to_ptr.vmem [resolvable:$true] %s38
    %41 = dma.hbm_to_vmem [thread:$0]  %s28, 192, %s39, %s30
    %s42 = smul.u32 %s10, 10
    %s43 = smul.addr %s42, 32
    %s44 = scalar_lea.hbm %s2, %s43
    %s45 = scalar_lea.vmem [#allocation3], 28
    %s46 = scalar_lea.sflag [#allocation2], 2
    // Predicated region
    $region10: #{tpu_custom_call.1} parent=1 // pred_check
      _
    $region11: #{tpu_custom_call.1} parent=1 // pred_check_branch
      %48 = sbr.rel target = $region13
    $region12: #{tpu_custom_call.1} parent=1 // pred_region
      %49 = sst [smem:[#allocation7]] [#allocation12]
      %50 = sst [smem:[#allocation8]] [#allocation11]
    $region13: #{tpu_custom_call.1} parent=1 // pred_fallthru
      _
    %52 = shalt.err (0)
    %s54 = sshll.u32 %s45, 4
    %s55 = int_to_ptr.vmem [resolvable:$true] %s54
    %57 = dma.hbm_to_vmem [thread:$0]  %s44, 320, %s55, %s46
    %s58 = smul.u32 2, 1
    %s59 = smul.u32 %s58, 8
    %s60 = sshll.u32 %s59, 4
    %61 = dma.done [#allocation2], %s60
    %s62 = smul.u32 %s58, 6
    %s63 = sshll.u32 %s62, 4
    %64 = dma.done %s30, %s63
    %s65 = smul.u32 %s58, 10
    %s66 = sshll.u32 %s65, 4
    %67 = dma.done %s46, %s66
    // Predicated region
    $region14: #{tpu_custom_call.1} parent=1 // pred_check
      _
    $region15: #{tpu_custom_call.1} parent=1 // pred_check_branch
      %69 = sbr.rel (0) target = $region17
    $region16: #{tpu_custom_call.1} parent=1 // pred_region
      %s71 = ssub.s32 768, 768
      %72 = vsyncadd [#allocation4], %s71
      %s74 = sshll.u32 [#allocation3], 4
      %s75 = int_to_ptr.vmem [resolvable:$true] %s74
      %77 = dma.vmem_to_hbm [thread:$0]  %s75, 768, %s3, [#allocation4]
    $region17: #{tpu_custom_call.1} parent=1 // pred_fallthru
      _
    // Predicated region
    $region18: #{tpu_custom_call.1} parent=1 // pred_check
      _
    $region19: #{tpu_custom_call.1} parent=1 // pred_check_branch
      %79 = sbr.rel (0) target = $region21
    $region20: #{tpu_custom_call.1} parent=1 // pred_region
      %80 = dma.done [#allocation4], 768
    $region21: #{tpu_custom_call.1} parent=1 // pred_fallthru
      _
    %81 = vsyncpa [#allocation4], 1
  %82 = vsyncmov [#allocation2]
  %s83 = vpop.sfrf %82
  %p84 = scmp.eq.s32.totalorder %s83, 0
  %p85 = pneg %p84
  %87 = shalt.err (%p85)
  %s88 = scalar_lea.sflag [#allocation2], 1
  %89 = vsyncmov %s88
  %s90 = vpop.sfrf %89
  %p91 = scmp.eq.s32.totalorder %s90, 0
  %p92 = pneg %p91
  %94 = shalt.err (%p92)
  %s95 = scalar_lea.sflag [#allocation2], 2
  %96 = vsyncmov %s95
  %s97 = vpop.sfrf %96
  %p98 = scmp.eq.s32.totalorder %s97, 0
  %p99 = pneg %p98
  %101 = shalt.err (%p99)

</llo_original>
